<compile_context>
chip_gen: v5e
topology: v5e:2x2
jax: 0.10.0
libtpu: 0.0.40
codegen_flags: <defaults>
</compile_context>

<pallas_src>
import math
import jax
import jax.numpy as jnp
from jax.experimental import pallas as pl
from jax.experimental.pallas import tpu as pltpu

# epsilons matching hyptorch.pmath conventions
_NORM_EPS = 1e-15      # clamp_min on vector norms
_ATANH_EPS = 1e-5      # artanh argument clamp
_ADD_EPS = 1e-5        # mobius_add denominator stabilizer
_PROJ_NORM_EPS = 1e-5  # project norm clamp
_PROJ_BND_EPS = 1e-3   # project boundary eps


def _artanh(z):
    z = jnp.clip(z, -1.0 + _ATANH_EPS, 1.0 - _ATANH_EPS)
    return 0.5 * jnp.log((1.0 + z) / (1.0 - z))


def _round_up(x, m):
    return (x + m - 1) // m * m


def hyp_linear_kernel(scal_ref, x_ref, wt_ref, bh_ref, o_ref, acc_ref, xsq_ref):
    """Grid = (batch tiles, K tiles). K (D_in) is the reduction axis, last."""
    k = pl.program_id(1)

    @pl.when(k == 0)
    def _init():
        acc_ref[...] = jnp.zeros_like(acc_ref)
        xsq_ref[...] = jnp.zeros_like(xsq_ref)

    # MXU matmul in the operands' native dtype, f32 accumulation.
    x = x_ref[...]
    acc_ref[...] += jnp.dot(x, wt_ref[...], preferred_element_type=jnp.float32)
    xf = x.astype(jnp.float32)
    xsq_ref[...] += jnp.sum(xf * xf, axis=-1, keepdims=True)

    @pl.when(k == pl.num_programs(1) - 1)
    def _finalize():
        c = scal_ref[0]
        sqrt_c = scal_ref[1]
        y2 = scal_ref[2]          # ||bias_h||^2  (grid-invariant, precomputed)
        maxnorm = scal_ref[3]     # (1 - eps) / sqrt(c)

        mx = acc_ref[...]                       # (tb, Dp) f32, = x @ W^T
        bias_h = bh_ref[...]                    # (1, Dp) f32, = expmap0(bias, c)

        # ---- Mobius matrix-vector multiplication --------------------------
        x_norm = jnp.maximum(jnp.sqrt(xsq_ref[...]), _NORM_EPS)    # (tb, 1)
        mx_sq = jnp.sum(mx * mx, axis=-1, keepdims=True)           # (tb, 1)
        mx_norm = jnp.maximum(jnp.sqrt(mx_sq), _NORM_EPS)
        scale_mv = (jnp.tanh(mx_norm / x_norm * _artanh(sqrt_c * x_norm))
                    / (mx_norm * sqrt_c))                          # (tb, 1)
        scale_mv = jnp.where(mx_sq == 0.0, 0.0, scale_mv)          # all-zero rows
        mv = scale_mv * mx                                         # (tb, Dp)

        # ---- Mobius addition mv (+)_c bias_h ------------------------------
        x2 = (scale_mv * scale_mv) * mx_sq                         # = ||mv||^2
        xy = jnp.sum(mv * bias_h, axis=-1, keepdims=True)          # (tb, 1)
        num = (1.0 + 2.0 * c * xy + c * y2) * mv + (1.0 - c * x2) * bias_h
        denom = 1.0 + 2.0 * c * xy + (c * c) * x2 * y2
        added = num * (1.0 / (denom + _ADD_EPS))                   # column recip

        # ---- project back onto the Poincare ball --------------------------
        add_norm = jnp.maximum(
            jnp.sqrt(jnp.sum(added * added, axis=-1, keepdims=True)),
            _PROJ_NORM_EPS)
        proj_scale = jnp.where(add_norm > maxnorm, maxnorm / add_norm, 1.0)
        o_ref[...] = (added * proj_scale).astype(o_ref.dtype)


def prepare_hyp_linear_params(weight, bias):
    """One-time parameter prep: transpose to (D_in, D_out) and lane-pad D_out to 128.

    Do this once at parameter creation, NOT per forward call.
    """
    d_out, d_in = weight.shape
    d_out_p = _round_up(d_out, 128)
    wt = weight.T                                       # (D_in, D_out)
    bias = bias.astype(jnp.float32)
    if d_out_p != d_out:
        wt = jnp.pad(wt, ((0, 0), (0, d_out_p - d_out)))
        bias = jnp.pad(bias, (0, d_out_p - d_out))
    return wt, bias, d_out


def hyp_linear(x, wt, bias_p, d_out, curvature, *, batch_tile=None, k_tile=None):
    """x: (B, D_in); wt: (D_in, D_out_p) pre-transposed/padded; bias_p: (D_out_p,)."""
    B, D_in = x.shape
    D_in_w, D_out_p = wt.shape
    assert D_in_w == D_in and D_out_p % 128 == 0

    # ---- batch tiling: tile multiple of 8, pad B so the tile divides it ----
    tb = batch_tile if batch_tile is not None else min(256, _round_up(B, 8))
    tb = max(8, _round_up(tb, 8))
    B_pad = _round_up(B, tb)
    x_p = jnp.pad(x, ((0, B_pad - B), (0, 0))) if B_pad != B else x

    # ---- K (D_in) tiling so a large weight streams instead of sitting resident
    if k_tile is not None:
        tk = k_tile
    elif D_in > 512 and D_in % 512 == 0:
        tk = 512
    else:
        tk = D_in
    assert D_in % tk == 0

    # ---- grid-invariant scalars / bias expmap, computed once per call ------
    c = jnp.asarray(curvature, jnp.float32)
    sqrt_c = jnp.sqrt(c)
    b2 = bias_p.astype(jnp.float32)[None, :]                         # (1, Dp)
    b_norm = jnp.maximum(jnp.sqrt(jnp.sum(b2 * b2, axis=-1, keepdims=True)),
                         _NORM_EPS)
    bias_h = jnp.tanh(sqrt_c * b_norm) * b2 / (sqrt_c * b_norm)      # expmap0
    y2 = jnp.sum(bias_h * bias_h)
    maxnorm = (1.0 - _PROJ_BND_EPS) / sqrt_c
    scalars = jnp.stack([c, sqrt_c, y2, maxnorm]).astype(jnp.float32)  # (4,)

    grid = (B_pad // tb, D_in // tk)

    itemsize = x.dtype.itemsize
    vmem_bytes = (2 * tb * tk * itemsize          # x tile (double buffered)
                  + 2 * tk * D_out_p * itemsize   # weight tile
                  + 2 * tb * D_out_p * itemsize   # output tile
                  + 2 * D_out_p * 4               # bias_h row
                  + tb * D_out_p * 4 + tb * 4     # scratch (acc + xsq)
                  + (2 << 20))                    # headroom
    vmem_bytes = int(min(max(vmem_bytes, 16 << 20), 64 << 20))

    cost = pl.CostEstimate(
        flops=2 * B_pad * D_in * D_out_p,
        transcendentals=4 * B_pad,
        bytes_accessed=itemsize * (B_pad * D_in + D_in * D_out_p + B_pad * D_out_p))

    out_p = pl.pallas_call(
        hyp_linear_kernel,
        out_shape=jax.ShapeDtypeStruct((B_pad, D_out_p), x.dtype),
        grid_spec=pltpu.PrefetchScalarGridSpec(
            num_scalar_prefetch=0,
            grid=grid,
            in_specs=[
                pl.BlockSpec((4,), lambda i, k: (0,), memory_space=pltpu.SMEM),
                pl.BlockSpec((tb, tk), lambda i, k: (i, k)),
                pl.BlockSpec((tk, D_out_p), lambda i, k: (k, 0)),
                pl.BlockSpec((1, D_out_p), lambda i, k: (0, 0)),
            ],
            out_specs=pl.BlockSpec((tb, D_out_p), lambda i, k: (i, 0)),
            scratch_shapes=[
                pltpu.VMEM((tb, D_out_p), jnp.float32),   # x @ W^T accumulator
                pltpu.VMEM((tb, 1), jnp.float32),         # partial ||x||^2
            ]),
        compiler_params=pltpu.CompilerParams(
            dimension_semantics=("parallel", "arbitrary"),
            vmem_limit_bytes=vmem_bytes),
        cost_estimate=cost,
    )(scalars, x_p, wt, bias_h)

    # TODO(synk): bias=False path of HypLinear (project(mv) only, no mobius add)
    # is not implemented; this kernel assumes the layer was built with bias=True.
    return out_p[:B, :d_out]


def hyp_linear_ref(x, weight, bias, c):
    """Pure-JAX reference (mirrors hyptorch pmath math)."""
    sqrt_c = jnp.sqrt(c)
    x_norm = jnp.maximum(jnp.linalg.norm(x, axis=-1, keepdims=True), _NORM_EPS)
    mx = x @ weight.T
    mx_norm = jnp.maximum(jnp.linalg.norm(mx, axis=-1, keepdims=True), _NORM_EPS)
    res_c = jnp.tanh(mx_norm / x_norm * _artanh(sqrt_c * x_norm)) * mx / (mx_norm * sqrt_c)
    mv = jnp.where(jnp.all(mx == 0.0, axis=-1, keepdims=True), 0.0, res_c)
    b = bias[None, :]
    b_norm = jnp.maximum(jnp.linalg.norm(b, axis=-1, keepdims=True), _NORM_EPS)
    bias_h = jnp.tanh(sqrt_c * b_norm) * b / (sqrt_c * b_norm)
    x2 = jnp.sum(mv * mv, -1, keepdims=True)
    y2 = jnp.sum(bias_h * bias_h, -1, keepdims=True)
    xy = jnp.sum(mv * bias_h, -1, keepdims=True)
    num = (1 + 2 * c * xy + c * y2) * mv + (1 - c * x2) * bias_h
    den = 1 + 2 * c * xy + c * c * x2 * y2
    added = num / (den + _ADD_EPS)
    norm = jnp.maximum(jnp.linalg.norm(added, axis=-1, keepdims=True), _PROJ_NORM_EPS)
    maxnorm = (1 - _PROJ_BND_EPS) / sqrt_c
    return jnp.where(norm > maxnorm, added / norm * maxnorm, added)


if __name__ == "__main__":
    key = jax.random.PRNGKey(0)

    def run_case(batch, in_features, out_features, curvature, case_key):
        kx, kw, kb = jax.random.split(case_key, 3)
        # Kaiming uniform with a=sqrt(5) -> bound = 1/sqrt(fan_in); bias same bound.
        bound = 1.0 / math.sqrt(in_features)
        weight = jax.random.uniform(kw, (out_features, in_features),
                                    minval=-bound, maxval=bound, dtype=jnp.float32)
        bias = jax.random.uniform(kb, (out_features,),
                                  minval=-bound, maxval=bound, dtype=jnp.float32)
        # Inputs scaled to lie well inside the unit Poincare ball.
        x = 0.1 * jax.random.normal(kx, (batch, in_features), dtype=jnp.float32)

        wt, bias_p, d_out = prepare_hyp_linear_params(weight, bias)
        out = hyp_linear(x, wt, bias_p, d_out, curvature)
        out = jax.block_until_ready(out)

        ref = hyp_linear_ref(x, weight, bias, curvature)
        assert out.shape == (batch, out_features)
        assert jnp.allclose(out, ref, atol=1e-5, rtol=1e-5), (
            f"mismatch vs reference for case ({batch},{in_features},{out_features})")

    k1, k2 = jax.random.split(key)
    run_case(8, 32, 32, 1.0, k1)    # aligned small case
    run_case(12, 32, 40, 0.7, k2)   # exercises batch padding + lane (D_out) padding

    print("KERNEL_OK")
</pallas_src>

<mosaic_0001>
module attributes {stable_mosaic.version = 11 : i64} {
  func.func @hyp_linear_kernel(%arg0: i32, %arg1: i32, %arg2: memref<4xf32, #tpu.memory_space<smem>>, %arg3: memref<8x32xf32, #tpu.memory_space<vmem>>, %arg4: memref<32x128xf32, #tpu.memory_space<vmem>>, %arg5: memref<1x128xf32, #tpu.memory_space<vmem>>, %arg6: memref<8x128xf32, #tpu.memory_space<vmem>>, %arg7: memref<8x128xf32, #tpu.memory_space<vmem>>, %arg8: memref<8x1xf32, #tpu.memory_space<vmem>>) attributes {dimension_semantics = [#tpu.dimension_semantics<parallel>, #tpu.dimension_semantics<arbitrary>], iteration_bounds = array<i64: 1, 1>, scalar_prefetch = 0 : i64, scratch_operands = 2 : i64, tpu.core_type = #tpu.core_type<tc>, window_params = [{transform_indices = @transform_0, window_bounds = array<i64: 4>}, {transform_indices = @transform_1, window_bounds = array<i64: 8, 32>}, {transform_indices = @transform_2, window_bounds = array<i64: 32, 128>}, {pipeline_mode = #tpu.pipeline_mode<synchronous>, transform_indices = @transform_3, window_bounds = array<i64: 1, 128>}, {transform_indices = @transform_4, window_bounds = array<i64: 8, 128>}]} {
    %c0_i32 = arith.constant 0 : i32
    %0 = arith.cmpi eq, %arg1, %c0_i32 : i32
    %1 = arith.extui %0 : i1 to i32
    %c0_i32_0 = arith.constant 0 : i32
    %2 = arith.cmpi ne, %1, %c0_i32_0 : i32
    scf.if %2 {
      %cst_15 = arith.constant 0.000000e+00 : f32
      %18 = vector.broadcast %cst_15 : f32 to vector<8x128xf32>
      %c0_16 = arith.constant 0 : index
      %c0_17 = arith.constant 0 : index
      %19 = vector.load %arg7[%c0_16, %c0_17] : memref<8x128xf32, #tpu.memory_space<vmem>>, vector<8x128xf32>
      tpu.vector_store %arg7[%c0_16, %c0_17], %18 {strides = array<i32>} : memref<8x128xf32, #tpu.memory_space<vmem>>, vector<8x128xf32>,
      %cst_18 = arith.constant 0.000000e+00 : f32
      %20 = vector.broadcast %cst_18 : f32 to vector<8x1xf32>
      %c0_19 = arith.constant 0 : index
      %c0_20 = arith.constant 0 : index
      %21 = vector.load %arg8[%c0_19, %c0_20] : memref<8x1xf32, #tpu.memory_space<vmem>>, vector<8x1xf32>
      tpu.vector_store %arg8[%c0_19, %c0_20], %20 {strides = array<i32>} : memref<8x1xf32, #tpu.memory_space<vmem>>, vector<8x1xf32>,
    } else {
    }
    %c0 = arith.constant 0 : index
    %c0_1 = arith.constant 0 : index
    %3 = vector.load %arg3[%c0, %c0_1] : memref<8x32xf32, #tpu.memory_space<vmem>>, vector<8x32xf32>
    %c0_2 = arith.constant 0 : index
    %c0_3 = arith.constant 0 : index
    %4 = vector.load %arg7[%c0_2, %c0_3] : memref<8x128xf32, #tpu.memory_space<vmem>>, vector<8x128xf32>
    %c0_4 = arith.constant 0 : index
    %c0_5 = arith.constant 0 : index
    %5 = vector.load %arg4[%c0_4, %c0_5] : memref<32x128xf32, #tpu.memory_space<vmem>>, vector<32x128xf32>
    %cst = arith.constant dense<0.000000e+00> : vector<8x128xf32>
    %6 = tpu.matmul %3, %5, %cst {dimension_numbers = #tpu.dot_dimension_numbers<[1], [0], [0], [1], [0, 0, 1, 1], [], []>} : vector<8x32xf32>, vector<32x128xf32>, vector<8x128xf32> -> vector<8x128xf32>
    %7 = arith.addf %4, %6 : vector<8x128xf32>
    %c0_6 = arith.constant 0 : index
    %c0_7 = arith.constant 0 : index
    %8 = vector.load %arg7[%c0_6, %c0_7] : memref<8x128xf32, #tpu.memory_space<vmem>>, vector<8x128xf32>
    tpu.vector_store %arg7[%c0_6, %c0_7], %7 {strides = array<i32>} : memref<8x128xf32, #tpu.memory_space<vmem>>, vector<8x128xf32>,
    %c0_8 = arith.constant 0 : index
    %c0_9 = arith.constant 0 : index
    %9 = vector.load %arg8[%c0_8, %c0_9] : memref<8x1xf32, #tpu.memory_space<vmem>>, vector<8x1xf32>
    %10 = arith.mulf %3, %3 : vector<8x32xf32>
    %cst_10 = arith.constant dense<0.000000e+00> : vector<8xf32>
    %11 = vector.multi_reduction <add>, %10, %cst_10 [1] : vector<8x32xf32> to vector<8xf32>
    %12 = vector.shape_cast %11 : vector<8xf32> to vector<8x1xf32>
    %13 = arith.addf %9, %12 : vector<8x1xf32>
    %c0_11 = arith.constant 0 : index
    %c0_12 = arith.constant 0 : index
    %14 = vector.load %arg8[%c0_11, %c0_12] : memref<8x1xf32, #tpu.memory_space<vmem>>, vector<8x1xf32>
    tpu.vector_store %arg8[%c0_11, %c0_12], %13 {strides = array<i32>} : memref<8x1xf32, #tpu.memory_space<vmem>>, vector<8x1xf32>,
    %c0_i32_13 = arith.constant 0 : i32
    %15 = arith.cmpi eq, %arg1, %c0_i32_13 : i32
    %16 = arith.extui %15 : i1 to i32
    %c0_i32_14 = arith.constant 0 : i32
    %17 = arith.cmpi ne, %16, %c0_i32_14 : i32
    scf.if %17 {
      %c0_15 = arith.constant 0 : index
      %18 = memref.load %arg2[%c0_15] : memref<4xf32, #tpu.memory_space<smem>>
      %c1 = arith.constant 1 : index
      %19 = memref.load %arg2[%c1] : memref<4xf32, #tpu.memory_space<smem>>
      %c2 = arith.constant 2 : index
      %20 = memref.load %arg2[%c2] : memref<4xf32, #tpu.memory_space<smem>>
      %c3 = arith.constant 3 : index
      %21 = memref.load %arg2[%c3] : memref<4xf32, #tpu.memory_space<smem>>
      %c0_16 = arith.constant 0 : index
      %c0_17 = arith.constant 0 : index
      %22 = vector.load %arg7[%c0_16, %c0_17] : memref<8x128xf32, #tpu.memory_space<vmem>>, vector<8x128xf32>
      %c0_18 = arith.constant 0 : index
      %c0_19 = arith.constant 0 : index
      %23 = vector.load %arg5[%c0_18, %c0_19] : memref<1x128xf32, #tpu.memory_space<vmem>>, vector<1x128xf32>
      %c0_20 = arith.constant 0 : index
      %c0_21 = arith.constant 0 : index
      %24 = vector.load %arg8[%c0_20, %c0_21] : memref<8x1xf32, #tpu.memory_space<vmem>>, vector<8x1xf32>
      %25 = math.sqrt %24 : vector<8x1xf32>
      %cst_22 = arith.constant 1.000000e-15 : f32
      %26 = vector.broadcast %cst_22 : f32 to vector<8x1xf32>
      %27 = arith.maximumf %25, %26 : vector<8x1xf32>
      %28 = arith.mulf %22, %22 : vector<8x128xf32>
      %cst_23 = arith.constant dense<0.000000e+00> : vector<8xf32>
      %29 = vector.multi_reduction <add>, %28, %cst_23 [1] : vector<8x128xf32> to vector<8xf32>
      %30 = vector.shape_cast %29 : vector<8xf32> to vector<8x1xf32>
      %31 = math.sqrt %30 : vector<8x1xf32>
      %cst_24 = arith.constant 1.000000e-15 : f32
      %32 = vector.broadcast %cst_24 : f32 to vector<8x1xf32>
      %33 = arith.maximumf %31, %32 : vector<8x1xf32>
      %34 = arith.divf %33, %27 : vector<8x1xf32>
      %35 = vector.broadcast %19 : f32 to vector<8x1xf32>
      %36 = arith.mulf %35, %27 : vector<8x1xf32>
      %cst_25 = arith.constant -0.999989986 : f32
      %cst_26 = arith.constant 0.999989986 : f32
      %37 = vector.broadcast %cst_25 : f32 to vector<8x1xf32>
      %38 = arith.maximumf %37, %36 : vector<8x1xf32>
      %39 = vector.broadcast %cst_26 : f32 to vector<8x1xf32>
      %40 = arith.minimumf %39, %38 : vector<8x1xf32>
      %cst_27 = arith.constant 1.000000e+00 : f32
      %41 = vector.broadcast %cst_27 : f32 to vector<8x1xf32>
      %42 = arith.addf %41, %40 : vector<8x1xf32>
      %cst_28 = arith.constant 1.000000e+00 : f32
      %43 = vector.broadcast %cst_28 : f32 to vector<8x1xf32>
      %44 = arith.subf %43, %40 : vector<8x1xf32>
      %45 = arith.divf %42, %44 : vector<8x1xf32>
      %46 = math.log %45 : vector<8x1xf32>
      %cst_29 = arith.constant 5.000000e-01 : f32
      %47 = vector.broadcast %cst_29 : f32 to vector<8x1xf32>
      %48 = arith.mulf %47, %46 : vector<8x1xf32>
      %49 = arith.mulf %34, %48 : vector<8x1xf32>
      %50 = math.tanh %49 : vector<8x1xf32>
      %51 = vector.broadcast %19 : f32 to vector<8x1xf32>
      %52 = arith.mulf %33, %51 : vector<8x1xf32>
      %53 = arith.divf %50, %52 : vector<8x1xf32>
      %cst_30 = arith.constant 0.000000e+00 : f32
      %54 = vector.broadcast %cst_30 : f32 to vector<8x1xf32>
      %55 = arith.cmpf oeq, %30, %54 : vector<8x1xf32>
      %cst_31 = arith.constant 0.000000e+00 : f32
      %56 = vector.broadcast %cst_31 : f32 to vector<8x1xf32>
      %57 = arith.select %55, %56, %53 : vector<8x1xi1>, vector<8x1xf32>
      %58 = vector.broadcast %57 : vector<8x1xf32> to vector<8x128xf32>
      %59 = arith.mulf %58, %22 : vector<8x128xf32>
      %60 = arith.mulf %57, %57 : vector<8x1xf32>
      %61 = arith.mulf %60, %30 : vector<8x1xf32>
      %62 = vector.broadcast %23 : vector<1x128xf32> to vector<8x128xf32>
      %63 = arith.mulf %59, %62 : vector<8x128xf32>
      %cst_32 = arith.constant dense<0.000000e+00> : vector<8xf32>
      %64 = vector.multi_reduction <add>, %63, %cst_32 [1] : vector<8x128xf32> to vector<8xf32>
      %65 = vector.shape_cast %64 : vector<8xf32> to vector<8x1xf32>
      %cst_33 = arith.constant 2.000000e+00 : f32
      %66 = arith.mulf %cst_33, %18 : f32
      %67 = vector.broadcast %66 : f32 to vector<8x1xf32>
      %68 = arith.mulf %67, %65 : vector<8x1xf32>
      %cst_34 = arith.constant 1.000000e+00 : f32
      %69 = vector.broadcast %cst_34 : f32 to vector<8x1xf32>
      %70 = arith.addf %69, %68 : vector<8x1xf32>
      %71 = arith.mulf %18, %20 : f32
      %72 = vector.broadcast %71 : f32 to vector<8x1xf32>
      %73 = arith.addf %70, %72 : vector<8x1xf32>
      %74 = vector.broadcast %73 : vector<8x1xf32> to vector<8x128xf32>
      %75 = arith.mulf %74, %59 : vector<8x128xf32>
      %76 = vector.broadcast %18 : f32 to vector<8x1xf32>
      %77 = arith.mulf %76, %61 : vector<8x1xf32>
      %cst_35 = arith.constant 1.000000e+00 : f32
      %78 = vector.broadcast %cst_35 : f32 to vector<8x1xf32>
      %79 = arith.subf %78, %77 : vector<8x1xf32>
      %80 = vector.broadcast %79 : vector<8x1xf32> to vector<8x128xf32>
      %81 = vector.broadcast %23 : vector<1x128xf32> to vector<8x128xf32>
      %82 = arith.mulf %80, %81 : vector<8x128xf32>
      %83 = arith.addf %75, %82 : vector<8x128xf32>
      %cst_36 = arith.constant 2.000000e+00 : f32
      %84 = arith.mulf %cst_36, %18 : f32
      %85 = vector.broadcast %84 : f32 to vector<8x1xf32>
      %86 = arith.mulf %85, %65 : vector<8x1xf32>
      %cst_37 = arith.constant 1.000000e+00 : f32
      %87 = vector.broadcast %cst_37 : f32 to vector<8x1xf32>
      %88 = arith.addf %87, %86 : vector<8x1xf32>
      %89 = arith.mulf %18, %18 : f32
      %90 = vector.broadcast %89 : f32 to vector<8x1xf32>
      %91 = arith.mulf %90, %61 : vector<8x1xf32>
      %92 = vector.broadcast %20 : f32 to vector<8x1xf32>
      %93 = arith.mulf %91, %92 : vector<8x1xf32>
      %94 = arith.addf %88, %93 : vector<8x1xf32>
      %cst_38 = arith.constant 9.99999974E-6 : f32
      %95 = vector.broadcast %cst_38 : f32 to vector<8x1xf32>
      %96 = arith.addf %94, %95 : vector<8x1xf32>
      %cst_39 = arith.constant 1.000000e+00 : f32
      %97 = vector.broadcast %cst_39 : f32 to vector<8x1xf32>
      %98 = arith.divf %97, %96 : vector<8x1xf32>
      %99 = vector.broadcast %98 : vector<8x1xf32> to vector<8x128xf32>
      %100 = arith.mulf %83, %99 : vector<8x128xf32>
      %101 = arith.mulf %100, %100 : vector<8x128xf32>
      %cst_40 = arith.constant dense<0.000000e+00> : vector<8xf32>
      %102 = vector.multi_reduction <add>, %101, %cst_40 [1] : vector<8x128xf32> to vector<8xf32>
      %103 = vector.shape_cast %102 : vector<8xf32> to vector<8x1xf32>
      %104 = math.sqrt %103 : vector<8x1xf32>
      %cst_41 = arith.constant 9.99999974E-6 : f32
      %105 = vector.broadcast %cst_41 : f32 to vector<8x1xf32>
      %106 = arith.maximumf %104, %105 : vector<8x1xf32>
      %107 = vector.broadcast %21 : f32 to vector<8x1xf32>
      %108 = arith.cmpf ogt, %106, %107 : vector<8x1xf32>
      %109 = vector.broadcast %21 : f32 to vector<8x1xf32>
      %110 = arith.divf %109, %106 : vector<8x1xf32>
      %cst_42 = arith.constant 1.000000e+00 : f32
      %111 = vector.broadcast %cst_42 : f32 to vector<8x1xf32>
      %112 = arith.select %108, %110, %111 : vector<8x1xi1>, vector<8x1xf32>
      %113 = vector.broadcast %112 : vector<8x1xf32> to vector<8x128xf32>
      %114 = arith.mulf %100, %113 : vector<8x128xf32>
      %c0_43 = arith.constant 0 : index
      %c0_44 = arith.constant 0 : index
      %115 = vector.load %arg6[%c0_43, %c0_44] : memref<8x128xf32, #tpu.memory_space<vmem>>, vector<8x128xf32>
      tpu.vector_store %arg6[%c0_43, %c0_44], %114 {strides = array<i32>} : memref<8x128xf32, #tpu.memory_space<vmem>>, vector<8x128xf32>,
    } else {
    }
    return
  }
  func.func @transform_0(%arg0: i32, %arg1: i32) -> i32 {
    %c0_i32 = arith.constant 0 : i32
    %c0_i32_0 = arith.constant 0 : i32
    return %c0_i32 : i32
  }
  func.func @transform_1(%arg0: i32, %arg1: i32) -> (i32, i32) {
    %c0_i32 = arith.constant 0 : i32
    return %arg0, %arg1 : i32, i32
  }
  func.func @transform_2(%arg0: i32, %arg1: i32) -> (i32, i32) {
    %c0_i32 = arith.constant 0 : i32
    %c0_i32_0 = arith.constant 0 : i32
    return %arg1, %c0_i32 : i32, i32
  }
  func.func @transform_3(%arg0: i32, %arg1: i32) -> (i32, i32) {
    %c0_i32 = arith.constant 0 : i32
    %c0_i32_0 = arith.constant 0 : i32
    %c0_i32_1 = arith.constant 0 : i32
    return %c0_i32, %c0_i32_0 : i32, i32
  }
  func.func @transform_4(%arg0: i32, %arg1: i32) -> (i32, i32) {
    %c0_i32 = arith.constant 0 : i32
    %c0_i32_0 = arith.constant 0 : i32
    return %arg0, %c0_i32 : i32, i32
  }
}

</mosaic_0001>

<llo_original>
// kernel: tpu_custom_call.1
$region0: #{tpu_custom_call.1}
  #allocation0 [shape = 'u32[]', space=smem, size = 0x4, offset = 0x4, fixed_abs, tag = 'smem constant byte address 0x4 - core index']
  #allocation1 [shape = 'u32[72,128]{1,0:T(1,128)}', space=vmem, size = 0x9000, scoped, tag = 'internal scratch']
  #allocation2 [shape = 'f32[8,128]{1,0:T(8,128)}', space=vmem, size = 0x1000, scoped, tag = 'scratch operand']
  #allocation3 [shape = 'f32[8,1]{1,0:T(8,128)}', space=vmem, size = 0x1000, scoped, tag = 'scratch operand']
  %s0 = inlined_call_operand.hbm [shape: f32[4], index: 0, kind: input, shape index: {}]
  %s1 = inlined_call_operand.hbm [shape: f32[8,32], index: 1, kind: input, shape index: {}]
  %s2 = inlined_call_operand.hbm [shape: f32[32,128], index: 2, kind: input, shape index: {}]
  %s3 = inlined_call_operand.vmem [shape: f32[1,128], index: 3, kind: input, shape index: {}]
  %s4 = inlined_call_operand.hbm [shape: f32[8,128], index: 4, kind: output, shape index: {}]
  %s5 = sld [smem:[#allocation0]]
  $region46: #{tpu_custom_call.1} parent=0
    _
  %s7 = ssub.s32 1, %s5
  %s8 = scalar_select 0, %s7, %s5
  $region1: #{tpu_custom_call.1} parent=0
    #allocation4 [shape = 'u8[512]{0}', space=smem, size = 0x200, scoped, tag = 'input window, operand 0, single buffered']
    #allocation5 [shape = 's32[1]{0}', space=sflag, size = 0x4, scoped, tag = 'scoped memory for tpu_custom_call.1']
    #allocation6 [shape = 's32[1]{0}', space=sflag, size = 0x4, scoped, tag = 'scoped memory for tpu_custom_call.1']
    #allocation7 [shape = 's32[1]{0}', space=sflag, size = 0x4, scoped, tag = 'scoped memory for tpu_custom_call.1']
    #allocation8 [shape = 'u8[4096]{0}', space=vmem, size = 0x1000, scoped, tag = 'input window, operand 1, single buffered']
    #allocation9 [shape = 'u8[16384]{0}', space=vmem, size = 0x4000, scoped, tag = 'input window, operand 2, single buffered']
    #allocation10 [shape = 's32[1]{0}', space=sflag, size = 0x4, scoped, tag = 'scoped memory for tpu_custom_call.1']
    #allocation11 [shape = 'u8[4096]{0}', space=vmem, size = 0x1000, scoped, tag = 'output window, operand 0, single buffered']
    %9 = vsyncpa [#allocation7], 0
    %10 = vsyncpa [#allocation5], 0
    %11 = vsyncpa [#allocation10], 0
    %12 = vsyncpa [#allocation6], 0
    // Predicated region
    $region2: #{tpu_custom_call.1} parent=1 // pred_check
      _
    $region3: #{tpu_custom_call.1} parent=1 // pred_check_branch
      %14 = sbr.rel (0) target = $region5
    $region4: #{tpu_custom_call.1} parent=1 // pred_region
      %16 = vsyncadd [#allocation7], 0
      %s18 = sshll.u32 %s0, 4
      %s19 = int_to_ptr.hbm [resolvable:$true] %s18
      %21 = dma.hbm_to_smem %s19, 16, [#allocation4], [#allocation7]
    $region5: #{tpu_custom_call.1} parent=1 // pred_fallthru
      _
    // Predicated region
    $region6: #{tpu_custom_call.1} parent=1 // pred_check
      _
    $region7: #{tpu_custom_call.1} parent=1 // pred_check_branch
      %23 = sbr.rel (0) target = $region9
    $region8: #{tpu_custom_call.1} parent=1 // pred_region
      %25 = vsyncadd [#allocation5], 0
      %s27 = sshll.u32 %s1, 4
      %s28 = int_to_ptr.hbm [resolvable:$true] %s27
      %s29 = sshll.u32 [#allocation8], 4
      %s30 = int_to_ptr.vmem [resolvable:$true] %s29
      %32 = dma.hbm_to_vmem [thread:$0]  %s28, 128, %s30, [#allocation5]
    $region9: #{tpu_custom_call.1} parent=1 // pred_fallthru
      _
    // Predicated region
    $region10: #{tpu_custom_call.1} parent=1 // pred_check
      _
    $region11: #{tpu_custom_call.1} parent=1 // pred_check_branch
      %34 = sbr.rel (0) target = $region13
    $region12: #{tpu_custom_call.1} parent=1 // pred_region
      %36 = vsyncadd [#allocation10], 0
      %s37 = sshll.u32 %s2, 4
      %s38 = int_to_ptr.hbm [resolvable:$true] %s37
      %s39 = sshll.u32 [#allocation9], 4
      %s40 = int_to_ptr.vmem [resolvable:$true] %s39
      %45 = dma.hbm_to_vmem [thread:$0]  %s38, 512, %s40, [#allocation10], 128, 128, 8
    $region13: #{tpu_custom_call.1} parent=1 // pred_fallthru
      _
    // Predicated region
    $region14: #{tpu_custom_call.1} parent=1 // pred_check
      _
    $region15: #{tpu_custom_call.1} parent=1 // pred_check_branch
      %47 = sbr.rel (0) target = $region17
    $region16: #{tpu_custom_call.1} parent=1 // pred_region
      _
    $region17: #{tpu_custom_call.1} parent=1 // pred_fallthru
      _
    // Predicated region
    $region18: #{tpu_custom_call.1} parent=1 // pred_check
      _
    $region19: #{tpu_custom_call.1} parent=1 // pred_check_branch
      %49 = sbr.rel (0) target = $region21
    $region20: #{tpu_custom_call.1} parent=1 // pred_region
      %51 = dma.done [#allocation7], 16
    $region21: #{tpu_custom_call.1} parent=1 // pred_fallthru
      _
    // Predicated region
    $region22: #{tpu_custom_call.1} parent=1 // pred_check
      _
    $region23: #{tpu_custom_call.1} parent=1 // pred_check_branch
      %53 = sbr.rel (0) target = $region25
    $region24: #{tpu_custom_call.1} parent=1 // pred_region
      %55 = dma.done [#allocation5], 128
    $region25: #{tpu_custom_call.1} parent=1 // pred_fallthru
      _
    // Predicated region
    $region26: #{tpu_custom_call.1} parent=1 // pred_check
      _
    $region27: #{tpu_custom_call.1} parent=1 // pred_check_branch
      %57 = sbr.rel (0) target = $region29
    $region28: #{tpu_custom_call.1} parent=1 // pred_region
      %59 = dma.done [#allocation10], 512
    $region29: #{tpu_custom_call.1} parent=1 // pred_fallthru
      _
    %60 = sfence
    %p61 = scmp.eq.s32.totalorder 0, 0
    // Predicated region
    $region30: #{tpu_custom_call.1} parent=1 // pred_check
      %p62 = pneg %p61
    $region31: #{tpu_custom_call.1} parent=1 // pred_check_branch
      %64 = sbr.rel (%p62) target = $region33
    $region32: #{tpu_custom_call.1} parent=1 // pred_region
      %65 = vst [vmem:[#allocation2] sm:$0xff] 0.0
      %vm66 = vcmask 7168
      %67 = vst.msk [vmem:[#allocation3] sm:$0xff] %vm66, 0.0
    $region33: #{tpu_custom_call.1} parent=1 // pred_fallthru
      _
    %v68 = vld [vmem:[#allocation8] sm:$0xff]
    %v69 = vld [vmem:[#allocation2] sm:$0xff]
    %v70 = vld [vmem:[#allocation9] sm:$0xff]
    %v71 = vld [vmem:[#allocation9 + $0x8] sm:$0xff]
    %v72 = vld [vmem:[#allocation9 + $0x10] sm:$0xff]
    %v73 = vld [vmem:[#allocation9 + $0x18] sm:$0xff]
    %vm74 = vcmask 261120
    %v76 = vsel %vm74, %v68, 0
    %78 = vmatpush.msra.mxu0 0.0
    %79 = vmatpush.msra.mxu0 0.0
    %80 = vmatpush.msra.mxu0 0.0
    %81 = vmatpush.msra.mxu0 0.0
    %82 = vmatpush.msra.mxu0 0.0
    %83 = vmatpush.msra.mxu0 0.0
    %84 = vmatpush.msra.mxu0 0.0
    %85 = vmatpush.msra.mxu0 0.0
    %86 = vmatpush.msra.mxu0 0.0
    %87 = vmatpush.msra.mxu0 0.0
    %88 = vmatpush.msra.mxu0 0.0
    %89 = vmatpush.msra.mxu0 0.0
    %90 = vmatpush.msra.mxu0 %v73
    %91 = vmatpush.msra.mxu0 %v72
    %92 = vmatpush.msra.mxu0 %v71
    %93 = vmatpush.msra.mxu0 %v70
    %94 = vmatmul.f32.gmra.mxu0 %v76
    %v95 = vpop.f32.mrf.mxu0
    %v96 = vadd.f32 0.0, %v95
    %97 = vdwg.mxu0
    %v98 = vadd.f32 %v69, %v96
    %99 = vst [vmem:[#allocation2] sm:$0xff] %v98
    %v100 = vld [vmem:[#allocation3] sm:$0xff]
    %v101 = vmul.f32 %v68, %v68
    %v102 = vsel %vm74, %v101, 0.0
    %103 = vadd.xlane.f32.xlu0 %v102
    %v104 = vpop.xlane.xlu0 %103
    %v105 = vadd.f32 %v100, %v104
    %vm106 = vcmask 7168
    %107 = vst.msk [vmem:[#allocation3] sm:$0xff] %vm106, %v105
    // Predicated region
    $region34: #{tpu_custom_call.1} parent=1 // pred_check
      %p108 = pneg %p61
    $region35: #{tpu_custom_call.1} parent=1 // pred_check_branch
      %110 = sbr.rel (%p108) target = $region37
    $region36: #{tpu_custom_call.1} parent=1 // pred_region
      %s111 = sld [smem:[#allocation4]]
      %s112 = sld [smem:[#allocation4 + $0x1]]
      %s113 = sld [smem:[#allocation4 + $0x2]]
      %s114 = sld [smem:[#allocation4 + $0x3]]
      %v115 = vld [vmem:[#allocation2] sm:$0xff]
      %v116 = vld [vmem:[%s3] sm:$0x1]
      %v117 = vld [vmem:[#allocation3] sm:$0xff]
      %v118 = vrsqrt.pop %v117
      %v119 = vmul.f32 %v118, %v117
      %v120 = vmul.f32 %v119, %v118
      %v121 = vmul.f32 0.5, %v120
      %v122 = vsub.f32 1.5, %v121
      %v123 = vmul.f32 %v118, %v122
      %v124 = vmul.f32 %v117, %v123
      %vm125 = vcmp.eq.f32.partialorder %v117, inf
      %v126 = vsel %vm125, %v117, %v124
      %vm127 = vcmp.eq.f32.partialorder %v117, 0.0
      %v128 = vand.u32 %v117, 2147483648
      %v129 = vsel %vm127, %v128, %v126
      %v130 = vmax.f32 %v129, 1e-15
      %v131 = vmul.f32 %v115, %v115
      %132 = vadd.xlane.f32.xlu0 %v131
      %v133 = vpop.xlane.xlu0 %132
      %v134 = vrsqrt.pop %v133
      %v135 = vmul.f32 %v134, %v133
      %v136 = vmul.f32 %v135, %v134
      %v137 = vmul.f32 0.5, %v136
      %v138 = vsub.f32 1.5, %v137
      %v139 = vmul.f32 %v134, %v138
      %v140 = vmul.f32 %v133, %v139
      %vm141 = vcmp.eq.f32.partialorder %v133, inf
      %v142 = vsel %vm141, %v133, %v140
      %vm143 = vcmp.eq.f32.partialorder %v133, 0.0
      %v144 = vand.u32 %v133, 2147483648
      %v145 = vsel %vm143, %v144, %v142
      %v146 = vmax.f32 %v145, 1e-15
      %v147 = vrcp.pop %v130
      %v148 = vmul.f32 %v130, %v147
      %v149 = vsub.f32 1.0, %v148
      %v150 = vmul.f32 %v147, %v149
      %v151 = vadd.f32 %v147, %v150
      %vm152 = vweird.f32 %v130
      %vm153 = vweird.f32 %v147
      %vm154 = vmor %vm152, %vm153
      %v155 = vsel %vm154, %v147, %v151
      %v156 = vand.u32 2147483647, %v130
      %vm157 = vcmp.eq.f32.partialorder %v156, 8.507059e+37
      %v158 = vand.u32 %v130, 2147483648
      %v159 = vor.u32 1.1754944e-38, %v158
      %v160 = vsel %vm157, %v159, %v155
      %v161 = vmul.f32 %v146, %v160
      %v162 = vstv %s112
      %v163 = vmul.f32 %v162, %v130
      %v164 = vmax.f32 %v163, -0.99999
      %v165 = vmin.f32 %v164, 0.99999
      %v166 = vadd.f32 %v165, 1.0
      %v167 = vsub.f32 1.0, %v165
      %v168 = vrcp.pop %v167
      %v169 = vmul.f32 %v167, %v168
      %v170 = vsub.f32 1.0, %v169
      %v171 = vmul.f32 %v168, %v170
      %v172 = vadd.f32 %v168, %v171
      %vm173 = vweird.f32 %v167
      %vm174 = vweird.f32 %v168
      %vm175 = vmor %vm173, %vm174
      %v176 = vsel %vm175, %v168, %v172
      %v177 = vand.u32 2147483647, %v167
      %vm178 = vcmp.eq.f32.partialorder %v177, 8.507059e+37
      %v179 = vand.u32 %v167, 2147483648
      %v180 = vor.u32 1.1754944e-38, %v179
      %v181 = vsel %vm178, %v180, %v176
      %v182 = vmul.f32 %v166, %v181
      %v183 = vlog2.pop %v182
      %v184 = vmul.f32 %v183, 0.6931472
      %v185 = vmul.f32 %v184, 0.5
      %v186 = vmul.f32 %v161, %v185
      %v187 = vtanh.pop %v186
      %v188 = vmul.f32 %v146, %v162
      %v189 = vrcp.pop %v188
      %v190 = vmul.f32 %v188, %v189
      %v191 = vsub.f32 1.0, %v190
      %v192 = vmul.f32 %v189, %v191
      %v193 = vadd.f32 %v189, %v192
      %vm194 = vweird.f32 %v188
      %vm195 = vweird.f32 %v189
      %vm196 = vmor %vm194, %vm195
      %v197 = vsel %vm196, %v189, %v193
      %v198 = vand.u32 2147483647, %v188
      %vm199 = vcmp.eq.f32.partialorder %v198, 8.507059e+37
      %v200 = vand.u32 %v188, 2147483648
      %v201 = vor.u32 1.1754944e-38, %v200
      %v202 = vsel %vm199, %v201, %v197
      %v203 = vmul.f32 %v187, %v202
      %vm204 = vcmp.eq.f32.partialorder %v133, 0.0
      %v205 = vsel %vm204, 0.0, %v203
      %207 = vset.pattern.permute.xlu0 0
      %208 = vperm.xlu0 %207, %v205
      %v209 = vpop.permute.xlu0 %208
      %v211 = vmul.f32 %v209, %v115
      %v212 = vmul.f32 %v205, %v205
      %v213 = vmul.f32 %v212, %v133
      %v215 = vperm.slane %v116, 0
      %v217 = vmul.f32 %v211, %v215
      %218 = vadd.xlane.f32.xlu0 %v217
      %v219 = vpop.xlane.xlu0 %218
      %s220 = smul.f32 %s111, 2.0
      %v221 = vstv %s220
      %v222 = vmul.f32 %v221, %v219
      %v223 = vadd.f32 %v222, 1.0
      %s224 = smul.f32 %s111, %s113
      %v225 = vstv %s224
      %v226 = vadd.f32 %v223, %v225
      %v227 = vmul.f32 %v226, %v211
      %v228 = vstv %s111
      %v229 = vmul.f32 %v228, %v213
      %v230 = vsub.f32 1.0, %v229
      %232 = vset.pattern.permute.xlu0 0
      %233 = vperm.xlu0 %232, %v230
      %v234 = vpop.permute.xlu0 %233
      %v236 = vmul.f32 %v234, %v215
      %v237 = vadd.f32 %v227, %v236
      %s238 = smul.f32 %s111, %s111
      %v239 = vstv %s238
      %v240 = vmul.f32 %v239, %v213
      %v241 = vstv %s113
      %v242 = vmul.f32 %v240, %v241
      %v243 = vadd.f32 %v223, %v242
      %v244 = vadd.f32 %v243, 1e-05
      %v245 = vrcp.pop %v244
      %v246 = vmul.f32 %v244, %v245
      %v247 = vsub.f32 1.0, %v246
      %v248 = vmul.f32 %v245, %v247
      %v249 = vadd.f32 %v245, %v248
      %vm250 = vweird.f32 %v244
      %vm251 = vweird.f32 %v245
      %vm252 = vmor %vm250, %vm251
      %v253 = vsel %vm252, %v245, %v249
      %v254 = vand.u32 2147483647, %v244
      %vm255 = vcmp.eq.f32.partialorder %v254, 8.507059e+37
      %v256 = vand.u32 %v244, 2147483648
      %v257 = vor.u32 1.1754944e-38, %v256
      %v258 = vsel %vm255, %v257, %v253
      %v259 = vmul.f32 1.0, %v258
      %261 = vset.pattern.permute.xlu0 0
      %262 = vperm.xlu0 %261, %v259
      %v263 = vpop.permute.xlu0 %262
      %v265 = vmul.f32 %v237, %v263
      %v266 = vmul.f32 %v265, %v265
      %267 = vadd.xlane.f32.xlu0 %v266
      %v268 = vpop.xlane.xlu0 %267
      %v269 = vrsqrt.pop %v268
      %v270 = vmul.f32 %v269, %v268
      %v271 = vmul.f32 %v270, %v269
      %v272 = vmul.f32 0.5, %v271
      %v273 = vsub.f32 1.5, %v272
      %v274 = vmul.f32 %v269, %v273
      %v275 = vmul.f32 %v268, %v274
      %vm276 = vcmp.eq.f32.partialorder %v268, inf
      %v277 = vsel %vm276, %v268, %v275
      %vm278 = vcmp.eq.f32.partialorder %v268, 0.0
      %v279 = vand.u32 %v268, 2147483648
      %v280 = vsel %vm278, %v279, %v277
      %v281 = vmax.f32 %v280, 1e-05
      %v282 = vstv %s114
      %vm283 = vcmp.gt.f32.partialorder %v281, %v282
      %v284 = vrcp.pop %v281
      %v285 = vmul.f32 %v281, %v284
      %v286 = vsub.f32 1.0, %v285
      %v287 = vmul.f32 %v284, %v286
      %v288 = vadd.f32 %v284, %v287
      %vm289 = vweird.f32 %v281
      %vm290 = vweird.f32 %v284
      %vm291 = vmor %vm289, %vm290
      %v292 = vsel %vm291, %v284, %v288
      %v293 = vand.u32 2147483647, %v281
      %vm294 = vcmp.eq.f32.partialorder %v293, 8.507059e+37
      %v295 = vand.u32 %v281, 2147483648
      %v296 = vor.u32 1.1754944e-38, %v295
      %v297 = vsel %vm294, %v296, %v292
      %v298 = vmul.f32 %v282, %v297
      %v299 = vsel %vm283, %v298, 1.0
      %v300 = vmul.f32 %v265, %v299
      %301 = vst [vmem:[#allocation11] sm:$0xff] %v300
    $region37: #{tpu_custom_call.1} parent=1 // pred_fallthru
      _
    // Predicated region
    $region38: #{tpu_custom_call.1} parent=1 // pred_check
      _
    $region39: #{tpu_custom_call.1} parent=1 // pred_check_branch
      %303 = sbr.rel (0) target = $region41
    $region40: #{tpu_custom_call.1} parent=1 // pred_region
      %305 = vsyncadd [#allocation6], 0
      %s307 = sshll.u32 [#allocation11], 4
      %s308 = int_to_ptr.vmem [resolvable:$true] %s307
      %s309 = sshll.u32 %s4, 4
      %s310 = int_to_ptr.hbm [resolvable:$true] %s309
      %312 = dma.vmem_to_hbm [thread:$0]  %s308, 128, %s310, [#allocation6]
    $region41: #{tpu_custom_call.1} parent=1 // pred_fallthru
      _
    // Predicated region
    $region42: #{tpu_custom_call.1} parent=1 // pred_check
      _
    $region43: #{tpu_custom_call.1} parent=1 // pred_check_branch
      %314 = sbr.rel (0) target = $region45
    $region44: #{tpu_custom_call.1} parent=1 // pred_region
      %316 = dma.done [#allocation6], 128
    $region45: #{tpu_custom_call.1} parent=1 // pred_fallthru
      _
    %317 = vsyncpa [#allocation5], 1
    %318 = vsyncpa [#allocation10], 1
    %319 = vsyncpa [#allocation6], 1
    %320 = vsyncpa [#allocation7], 1

</llo_original>
